<compile_context>
chip_gen: v7x
topology: tpu7x:2x2x1
jax: 0.10.0
libtpu: 0.0.40
codegen_flags: <defaults>
</compile_context>

<pallas_src>
import numpy as np
import jax
import jax.numpy as jnp
from jax.experimental import pallas as pl
from jax.experimental.pallas import tpu as pltpu


def _round_up(v, m):
    return ((v + m - 1) // m) * m


def _loss_kernel(px_ref, py_ref, lx_ref, ly_ref, goal_ref, exact_ref, valid_ref,
                 out_ref):
    # px/py: (Ba, Np) position slabs (lane dim = samples); cast per-block.
    px = px_ref[...].astype(jnp.float32)
    py = py_ref[...].astype(jnp.float32)

    # (Ba, 1) per-agent columns, broadcast along lanes.
    dx = px - lx_ref[...]
    dy = py - ly_ref[...]
    dist = jnp.sqrt(dx * dx + dy * dy)                     # (Ba, Np)

    prog = jnp.maximum(dist - goal_ref[...], 0.0)          # progress branch

    e = exact_ref[...]                                     # 1.0 if 0 <= tt < T
    v = valid_ref[...]                                     # 1.0 if tt >= 0
    out_ref[...] = e * dist + (1.0 - e) * (v * prog)


def global_target_pos_at_time_loss(x, agent_from_world, target_pos, target_time,
                                   urgency, global_t=0, pref_speed=1.42, dt=0.1):
    """Pallas TPU implementation of GlobalTargetPosAtTimeLoss.forward (agt_mask=None)."""
    B, N, T, _ = x.shape

    # ---- tiny (B,)-sized per-agent scalar prep (negligible XLA work) ----
    ltt = target_time.astype(jnp.int32) - jnp.int32(global_t)            # (B,)
    t_sel = jnp.clip(ltt, 0, T - 1)                                      # timestep to use
    afw = agent_from_world.astype(jnp.float32)
    tgt = target_pos.astype(jnp.float32)
    # world -> agent frame transform of the target (GeoUtils.transform_points_tensor)
    lx = afw[:, 0, 0] * tgt[:, 0] + afw[:, 0, 1] * tgt[:, 1] + afw[:, 0, 2]
    ly = afw[:, 1, 0] * tgt[:, 0] + afw[:, 1, 1] * tgt[:, 1] + afw[:, 1, 2]
    goal = ltt.astype(jnp.float32) * (dt * pref_speed) * (1.0 - urgency.astype(jnp.float32))
    is_exact = jnp.logical_and(ltt >= 0, ltt < T).astype(jnp.float32)    # (B,)
    is_valid = (ltt >= 0).astype(jnp.float32)                            # (B,)

    # ---- gather only the needed timestep per agent: (B, N) px / py slabs ----
    # Reads ~2*B*N elements from HBM instead of transposing the whole slab.
    xy_sel = jnp.take_along_axis(x[..., :2],
                                 t_sel[:, None, None, None], axis=2)     # (B, N, 1, 2)
    xy_sel = xy_sel[:, :, 0, :]                                          # (B, N, 2)
    px = xy_sel[..., 0]                                                  # (B, N), x dtype
    py = xy_sel[..., 1]

    # ---- pad to sublane/lane-dense tiles ----
    Ba = 256
    if B <= Ba:
        padB = _round_up(B, 8)
        Ba = padB
    else:
        padB = _round_up(B, Ba)
    padN = _round_up(N, 128)

    px = jnp.pad(px, ((0, padB - B), (0, padN - N)))
    py = jnp.pad(py, ((0, padB - B), (0, padN - N)))

    def _col(v):  # (B,) -> (padB, 1) f32 column (pads are zero -> masks force 0)
        return jnp.pad(v.astype(jnp.float32), (0, padB - B))[:, None]

    lx_c, ly_c, goal_c = _col(lx), _col(ly), _col(goal)
    exact_c, valid_c = _col(is_exact), _col(is_valid)

    grid = (padB // Ba,)
    slab_spec = pl.BlockSpec((Ba, padN), lambda i: (i, 0))
    col_spec = pl.BlockSpec((Ba, 1), lambda i: (i, 0))

    out = pl.pallas_call(
        _loss_kernel,
        out_shape=jax.ShapeDtypeStruct((padB, padN), jnp.float32),
        grid=grid,
        in_specs=[slab_spec, slab_spec, col_spec, col_spec, col_spec, col_spec, col_spec],
        out_specs=slab_spec,
        compiler_params=pltpu.CompilerParams(dimension_semantics=("parallel",)),
    )(px, py, lx_c, ly_c, goal_c, exact_c, valid_c)

    return out[:B, :N]


def _reference_loss(x, afw, tgt_pos, tgt_time, urgency, global_t, pref_speed=1.42, dt=0.1):
    """Pure numpy reference reproducing the PyTorch module."""
    x = np.asarray(x); afw = np.asarray(afw)
    tgt_pos = np.asarray(tgt_pos); tgt_time = np.asarray(tgt_time)
    urgency = np.asarray(urgency)
    B, N, T, _ = x.shape
    R = afw[:, :2, :2]
    tvec = afw[:, :2, 2]
    lt = np.einsum('bij,bj->bi', R, tgt_pos) + tvec
    ltt = tgt_time - global_t
    loss = np.zeros((B, N), np.float32)
    for b in range(B):
        if 0 <= ltt[b] < T:
            loss[b] = np.linalg.norm(x[b, :, int(ltt[b]), :2] - lt[b], axis=-1)
        elif ltt[b] >= 0:
            fd = np.linalg.norm(x[b, :, -1, :2] - lt[b], axis=-1)
            gd = ltt[b] * dt * pref_speed * (1.0 - urgency[b])
            loss[b] = np.maximum(fd - gd, 0.0)
        # else: stays 0
    return loss


if __name__ == "__main__":
    B, N, T = 4, 8, 8
    key = jax.random.PRNGKey(0)
    k1, k2, k3, k4 = jax.random.split(key, 4)

    x = jax.random.normal(k1, (B, N, T, 6), dtype=jnp.float32) * 2.0

    # deterministic agent_from_world: rotation + translation, last row [0, 0, 1]
    angles = jax.random.uniform(k2, (B,), minval=-np.pi, maxval=np.pi)
    c, s = jnp.cos(angles), jnp.sin(angles)
    trans = jax.random.normal(k3, (B, 2), dtype=jnp.float32) * 3.0
    agent_from_world = jnp.stack([
        jnp.stack([c, -s, trans[:, 0]], axis=-1),
        jnp.stack([s, c, trans[:, 1]], axis=-1),
        jnp.stack([jnp.zeros(B), jnp.zeros(B), jnp.ones(B)], axis=-1),
    ], axis=1).astype(jnp.float32)                                      # (B, 3, 3)

    target_pos = jax.random.normal(k4, (B, 2), dtype=jnp.float32) * 5.0  # (B, 2)
    # exercise exact / progress / out-of-range branches (global_t = 2, horizon T = 8)
    target_time = jnp.array([3, 12, 1, 20], dtype=jnp.int32)             # (B,)
    urgency = jnp.array([0.3, 0.7, 0.5, 0.9], dtype=jnp.float32)         # (B,)
    global_t = 2

    loss = global_target_pos_at_time_loss(
        x, agent_from_world, target_pos, target_time, urgency,
        global_t=global_t, pref_speed=1.42, dt=0.1)
    loss = jax.block_until_ready(loss)

    ref = _reference_loss(x, agent_from_world, target_pos, target_time, urgency,
                          global_t, pref_speed=1.42, dt=0.1)
    np.testing.assert_allclose(np.asarray(loss), ref, rtol=1e-4, atol=1e-4)

    print("KERNEL_OK")
</pallas_src>

<mosaic_0001>
module attributes {stable_mosaic.version = 11 : i64} {
  func.func @_loss_kernel(%arg0: i32, %arg1: memref<8x128xf32, #tpu.memory_space<vmem>>, %arg2: memref<8x128xf32, #tpu.memory_space<vmem>>, %arg3: memref<8x1xf32, #tpu.memory_space<vmem>>, %arg4: memref<8x1xf32, #tpu.memory_space<vmem>>, %arg5: memref<8x1xf32, #tpu.memory_space<vmem>>, %arg6: memref<8x1xf32, #tpu.memory_space<vmem>>, %arg7: memref<8x1xf32, #tpu.memory_space<vmem>>, %arg8: memref<8x128xf32, #tpu.memory_space<vmem>>) attributes {dimension_semantics = [#tpu.dimension_semantics<parallel>], iteration_bounds = array<i64: 1>, scalar_prefetch = 0 : i64, scratch_operands = 0 : i64, tpu.core_type = #tpu.core_type<tc>, window_params = [{transform_indices = @transform_0, window_bounds = array<i64: 8, 128>}, {transform_indices = @transform_1, window_bounds = array<i64: 8, 128>}, {transform_indices = @transform_2, window_bounds = array<i64: 8, 1>}, {transform_indices = @transform_3, window_bounds = array<i64: 8, 1>}, {transform_indices = @transform_4, window_bounds = array<i64: 8, 1>}, {transform_indices = @transform_5, window_bounds = array<i64: 8, 1>}, {transform_indices = @transform_6, window_bounds = array<i64: 8, 1>}, {transform_indices = @transform_7, window_bounds = array<i64: 8, 128>}]} {
    %c0 = arith.constant 0 : index
    %c0_0 = arith.constant 0 : index
    %0 = vector.load %arg1[%c0, %c0_0] : memref<8x128xf32, #tpu.memory_space<vmem>>, vector<8x128xf32>
    %c0_1 = arith.constant 0 : index
    %c0_2 = arith.constant 0 : index
    %1 = vector.load %arg2[%c0_1, %c0_2] : memref<8x128xf32, #tpu.memory_space<vmem>>, vector<8x128xf32>
    %c0_3 = arith.constant 0 : index
    %c0_4 = arith.constant 0 : index
    %2 = vector.load %arg3[%c0_3, %c0_4] : memref<8x1xf32, #tpu.memory_space<vmem>>, vector<8x1xf32>
    %3 = vector.broadcast %2 : vector<8x1xf32> to vector<8x128xf32>
    %4 = arith.subf %0, %3 : vector<8x128xf32>
    %c0_5 = arith.constant 0 : index
    %c0_6 = arith.constant 0 : index
    %5 = vector.load %arg4[%c0_5, %c0_6] : memref<8x1xf32, #tpu.memory_space<vmem>>, vector<8x1xf32>
    %6 = vector.broadcast %5 : vector<8x1xf32> to vector<8x128xf32>
    %7 = arith.subf %1, %6 : vector<8x128xf32>
    %8 = arith.mulf %4, %4 : vector<8x128xf32>
    %9 = arith.mulf %7, %7 : vector<8x128xf32>
    %10 = arith.addf %8, %9 : vector<8x128xf32>
    %11 = math.sqrt %10 : vector<8x128xf32>
    %c0_7 = arith.constant 0 : index
    %c0_8 = arith.constant 0 : index
    %12 = vector.load %arg5[%c0_7, %c0_8] : memref<8x1xf32, #tpu.memory_space<vmem>>, vector<8x1xf32>
    %13 = vector.broadcast %12 : vector<8x1xf32> to vector<8x128xf32>
    %14 = arith.subf %11, %13 : vector<8x128xf32>
    %cst = arith.constant 0.000000e+00 : f32
    %15 = vector.broadcast %cst : f32 to vector<8x128xf32>
    %16 = arith.maximumf %14, %15 : vector<8x128xf32>
    %c0_9 = arith.constant 0 : index
    %c0_10 = arith.constant 0 : index
    %17 = vector.load %arg6[%c0_9, %c0_10] : memref<8x1xf32, #tpu.memory_space<vmem>>, vector<8x1xf32>
    %c0_11 = arith.constant 0 : index
    %c0_12 = arith.constant 0 : index
    %18 = vector.load %arg7[%c0_11, %c0_12] : memref<8x1xf32, #tpu.memory_space<vmem>>, vector<8x1xf32>
    %19 = vector.broadcast %17 : vector<8x1xf32> to vector<8x128xf32>
    %20 = arith.mulf %19, %11 : vector<8x128xf32>
    %cst_13 = arith.constant 1.000000e+00 : f32
    %21 = vector.broadcast %cst_13 : f32 to vector<8x1xf32>
    %22 = arith.subf %21, %17 : vector<8x1xf32>
    %23 = vector.broadcast %18 : vector<8x1xf32> to vector<8x128xf32>
    %24 = arith.mulf %23, %16 : vector<8x128xf32>
    %25 = vector.broadcast %22 : vector<8x1xf32> to vector<8x128xf32>
    %26 = arith.mulf %25, %24 : vector<8x128xf32>
    %27 = arith.addf %20, %26 : vector<8x128xf32>
    %c0_14 = arith.constant 0 : index
    %c0_15 = arith.constant 0 : index
    %28 = vector.load %arg8[%c0_14, %c0_15] : memref<8x128xf32, #tpu.memory_space<vmem>>, vector<8x128xf32>
    tpu.vector_store %arg8[%c0_14, %c0_15], %27 {strides = array<i32>} : memref<8x128xf32, #tpu.memory_space<vmem>>, vector<8x128xf32>,
    return
  }
  func.func @transform_0(%arg0: i32) -> (i32, i32) {
    %c0_i32 = arith.constant 0 : i32
    %c0_i32_0 = arith.constant 0 : i32
    return %arg0, %c0_i32 : i32, i32
  }
  func.func @transform_1(%arg0: i32) -> (i32, i32) {
    %c0_i32 = arith.constant 0 : i32
    %c0_i32_0 = arith.constant 0 : i32
    return %arg0, %c0_i32 : i32, i32
  }
  func.func @transform_2(%arg0: i32) -> (i32, i32) {
    %c0_i32 = arith.constant 0 : i32
    %c0_i32_0 = arith.constant 0 : i32
    return %arg0, %c0_i32 : i32, i32
  }
  func.func @transform_3(%arg0: i32) -> (i32, i32) {
    %c0_i32 = arith.constant 0 : i32
    %c0_i32_0 = arith.constant 0 : i32
    return %arg0, %c0_i32 : i32, i32
  }
  func.func @transform_4(%arg0: i32) -> (i32, i32) {
    %c0_i32 = arith.constant 0 : i32
    %c0_i32_0 = arith.constant 0 : i32
    return %arg0, %c0_i32 : i32, i32
  }
  func.func @transform_5(%arg0: i32) -> (i32, i32) {
    %c0_i32 = arith.constant 0 : i32
    %c0_i32_0 = arith.constant 0 : i32
    return %arg0, %c0_i32 : i32, i32
  }
  func.func @transform_6(%arg0: i32) -> (i32, i32) {
    %c0_i32 = arith.constant 0 : i32
    %c0_i32_0 = arith.constant 0 : i32
    return %arg0, %c0_i32 : i32, i32
  }
  func.func @transform_7(%arg0: i32) -> (i32, i32) {
    %c0_i32 = arith.constant 0 : i32
    %c0_i32_0 = arith.constant 0 : i32
    return %arg0, %c0_i32 : i32, i32
  }
}

</mosaic_0001>

<llo_original>
// kernel: tpu_custom_call.1
$region0: #{tpu_custom_call.1}
  #allocation0 [shape = 'u32[]', space=smem, size = 0x4, offset = 0x4, fixed_abs, tag = 'smem constant byte address 0x4 - core index']
  #allocation1 [shape = 'u32[144,128]{1,0:T(1,128)}', space=vmem, size = 0x12000, scoped, tag = 'internal scratch']
  %s0 = inlined_call_operand.vmem [shape: f32[8,128], index: 0, kind: input, shape index: {}]
  %s1 = inlined_call_operand.vmem [shape: f32[8,128], index: 1, kind: input, shape index: {}]
  %s2 = inlined_call_operand.vmem [shape: f32[8,1], index: 2, kind: input, shape index: {}]
  %s3 = inlined_call_operand.vmem [shape: f32[8,1], index: 3, kind: input, shape index: {}]
  %s4 = inlined_call_operand.vmem [shape: f32[8,1], index: 4, kind: input, shape index: {}]
  %s5 = inlined_call_operand.vmem [shape: f32[8,1], index: 5, kind: input, shape index: {}]
  %s6 = inlined_call_operand.vmem [shape: f32[8,1], index: 6, kind: input, shape index: {}]
  %s7 = inlined_call_operand.hbm [shape: f32[8,128], index: 7, kind: output, shape index: {}]
  %s8 = sld [smem:[#allocation0]]
  $region38: #{tpu_custom_call.1} parent=0
    _
  %s10 = ssub.s32 1, %s8
  %s11 = scalar_select 0, %s10, %s8
  $region1: #{tpu_custom_call.1} parent=0
    #allocation2 [shape = 'u8[4096]{0}', space=vmem, size = 0x1000, scoped, tag = 'output window, operand 0, single buffered']
    #allocation3 [shape = 's32[1]{0}', space=sflag, size = 0x4, scoped, tag = 'scoped memory for tpu_custom_call.1']
    %12 = vsyncpa [#allocation3], 0
    // Predicated region
    $region2: #{tpu_custom_call.1} parent=1 // pred_check
      _
    $region3: #{tpu_custom_call.1} parent=1 // pred_check_branch
      %14 = sbr.rel (0) target = $region5
    $region4: #{tpu_custom_call.1} parent=1 // pred_region
      _
    $region5: #{tpu_custom_call.1} parent=1 // pred_fallthru
      _
    // Predicated region
    $region6: #{tpu_custom_call.1} parent=1 // pred_check
      _
    $region7: #{tpu_custom_call.1} parent=1 // pred_check_branch
      %16 = sbr.rel (0) target = $region9
    $region8: #{tpu_custom_call.1} parent=1 // pred_region
      _
    $region9: #{tpu_custom_call.1} parent=1 // pred_fallthru
      _
    // Predicated region
    $region10: #{tpu_custom_call.1} parent=1 // pred_check
      _
    $region11: #{tpu_custom_call.1} parent=1 // pred_check_branch
      %18 = sbr.rel (0) target = $region13
    $region12: #{tpu_custom_call.1} parent=1 // pred_region
      _
    $region13: #{tpu_custom_call.1} parent=1 // pred_fallthru
      _
    // Predicated region
    $region14: #{tpu_custom_call.1} parent=1 // pred_check
      _
    $region15: #{tpu_custom_call.1} parent=1 // pred_check_branch
      %20 = sbr.rel (0) target = $region17
    $region16: #{tpu_custom_call.1} parent=1 // pred_region
      _
    $region17: #{tpu_custom_call.1} parent=1 // pred_fallthru
      _
    // Predicated region
    $region18: #{tpu_custom_call.1} parent=1 // pred_check
      _
    $region19: #{tpu_custom_call.1} parent=1 // pred_check_branch
      %22 = sbr.rel (0) target = $region21
    $region20: #{tpu_custom_call.1} parent=1 // pred_region
      _
    $region21: #{tpu_custom_call.1} parent=1 // pred_fallthru
      _
    // Predicated region
    $region22: #{tpu_custom_call.1} parent=1 // pred_check
      _
    $region23: #{tpu_custom_call.1} parent=1 // pred_check_branch
      %24 = sbr.rel (0) target = $region25
    $region24: #{tpu_custom_call.1} parent=1 // pred_region
      _
    $region25: #{tpu_custom_call.1} parent=1 // pred_fallthru
      _
    // Predicated region
    $region26: #{tpu_custom_call.1} parent=1 // pred_check
      _
    $region27: #{tpu_custom_call.1} parent=1 // pred_check_branch
      %26 = sbr.rel (0) target = $region29
    $region28: #{tpu_custom_call.1} parent=1 // pred_region
      _
    $region29: #{tpu_custom_call.1} parent=1 // pred_fallthru
      _
    %v27 = vld [vmem:[%s0] sm:$0xff]
    %v28 = vld [vmem:[%s1] sm:$0xff]
    %v29 = vld [vmem:[%s2] sm:$0xff]
    %31 = vset.pattern.permute.xlu0 0
    %32 = vperm.xlu0 %31, %v29
    %v33 = vpop.permute.xlu0 %32
    %v35 = vsub.f32 %v27, %v33
    %v36 = vld [vmem:[%s3] sm:$0xff]
    %38 = vset.pattern.permute.xlu0 0
    %39 = vperm.xlu0 %38, %v36
    %v40 = vpop.permute.xlu0 %39
    %v42 = vsub.f32 %v28, %v40
    %v43 = vmul.f32 %v35, %v35
    %v44 = vmul.f32 %v42, %v42
    %v45 = vadd.f32 %v43, %v44
    %v46 = vrsqrt.pop %v45
    %v47 = vmul.f32 %v45, %v46
    %vm48 = vcmp.eq.f32.partialorder %v45, inf
    %v49 = vsel %vm48, %v45, %v47
    %vm50 = vcmp.eq.f32.partialorder %v45, 0.0
    %v51 = vand.u32 %v45, 2147483648
    %v52 = vsel %vm50, %v51, %v49
    %v53 = vld [vmem:[%s4] sm:$0xff]
    %55 = vset.pattern.permute.xlu0 0
    %56 = vperm.xlu0 %55, %v53
    %v57 = vpop.permute.xlu0 %56
    %v59 = vsub.f32 %v52, %v57
    %v60 = vmax.f32 %v59, 0.0
    %v61 = vld [vmem:[%s5] sm:$0xff]
    %v62 = vld [vmem:[%s6] sm:$0xff]
    %64 = vset.pattern.permute.xlu0 0
    %65 = vperm.xlu0 %64, %v61
    %v66 = vpop.permute.xlu0 %65
    %v68 = vmul.f32 %v66, %v52
    %v69 = vsub.f32 1.0, %v61
    %71 = vset.pattern.permute.xlu0 0
    %72 = vperm.xlu0 %71, %v62
    %v73 = vpop.permute.xlu0 %72
    %v75 = vmul.f32 %v73, %v60
    %77 = vset.pattern.permute.xlu0 0
    %78 = vperm.xlu0 %77, %v69
    %v79 = vpop.permute.xlu0 %78
    %v81 = vmul.f32 %v79, %v75
    %v82 = vadd.f32 %v68, %v81
    %83 = vst [vmem:[#allocation2] sm:$0xff] %v82
    // Predicated region
    $region30: #{tpu_custom_call.1} parent=1 // pred_check
      _
    $region31: #{tpu_custom_call.1} parent=1 // pred_check_branch
      %85 = sbr.rel (0) target = $region33
    $region32: #{tpu_custom_call.1} parent=1 // pred_region
      %s87 = ssub.s32 128, 128
      %88 = vsyncadd [#allocation3], %s87
      %s90 = sshll.u32 [#allocation2], 4
      %s91 = int_to_ptr.vmem [resolvable:$true] %s90
      %93 = dma.vmem_to_hbm [thread:$0]  %s91, 128, %s7, [#allocation3]
    $region33: #{tpu_custom_call.1} parent=1 // pred_fallthru
      _
    // Predicated region
    $region34: #{tpu_custom_call.1} parent=1 // pred_check
      _
    $region35: #{tpu_custom_call.1} parent=1 // pred_check_branch
      %95 = sbr.rel (0) target = $region37
    $region36: #{tpu_custom_call.1} parent=1 // pred_region
      %96 = dma.done [#allocation3], 128
    $region37: #{tpu_custom_call.1} parent=1 // pred_fallthru
      _
    %97 = vsyncpa [#allocation3], 1

</llo_original>
